<compile_context>
chip_gen: v7x
topology: tpu7x:2x2x1
jax: 0.10.0
libtpu: 0.0.40
codegen_flags: <defaults>
</compile_context>

<pallas_src>
import functools

import jax
import jax.numpy as jnp
from jax.experimental import pallas as pl
from jax.experimental.pallas import tpu as pltpu

_LANE = 128
_SUBLANE = 8
_NEG_BIG = -1e30          # drives padded logits to ~0 probability (f32 only)
_DEFAULT_BLOCK_B = 1024   # batch tile cap (raised per review; VMEM-guarded below)

# Generation-aware VMEM budget (v5e/v6e: 128 MiB, v7x: 64 MiB per TC).
try:
    _VMEM_CAP = int(pltpu.get_tpu_info().vmem_capacity_bytes)
except Exception:
    _VMEM_CAP = 64 << 20  # conservative default = v7x per-TC VMEM
_VMEM_BUDGET = int(0.75 * _VMEM_CAP)


def _round_up(x, m):
    return (x + m - 1) // m * m


def _round_down(x, m):
    return x // m * m


def _pad2d(a, rows, cols, fill=0.0):
    r, c = a.shape
    if r == rows and c == cols:
        return a
    out = jnp.full((rows, cols), fill, dtype=a.dtype)
    return out.at[:r, :c].set(a)


def _resident_spec(shape):
    """Grid-invariant (VMEM-resident) operand; single-buffered when supported."""
    try:
        return pl.BlockSpec(shape, lambda i: (0, 0), pipeline_mode=pl.Buffered(1))
    except (TypeError, AttributeError):
        return pl.BlockSpec(shape, lambda i: (0, 0))


def _choose_batch_tile(B, cap, min_steps=2):
    """Largest multiple-of-8 tile <= cap that divides the sublane-rounded batch."""
    B8 = _round_up(B, _SUBLANE)
    cap = max(_SUBLANE, min(_round_down(cap, _SUBLANE), B8))
    # Give v7x's two TensorCores at least `min_steps` grid steps when possible.
    if B8 // cap < min_steps and B8 >= min_steps * _SUBLANE:
        cap = max(_SUBLANE, _round_down(B8 // min_steps, _SUBLANE))
    tb = _SUBLANE
    for t in range(cap, _SUBLANE - 1, -_SUBLANE):
        if B8 % t == 0:          # t == 8 always divides B8, so this terminates
            tb = t
            break
    return tb, B8


def _make_mlp_kernel(n_layers):
    """Fused MLP + log_softmax kernel for `n_layers` linear layers (static)."""

    def kernel(*refs):
        x_ref = refs[0]
        o_ref = refs[-1]
        wb = refs[1:-1]                           # w1, b1, ..., wn, bn

        # MXU: bf16 operands, f32 accumulate (no-op cast if x is already bf16).
        h = x_ref[...].astype(jnp.bfloat16)
        z = None
        for li in range(n_layers):
            w = wb[2 * li][...]                   # (K_pad, N_pad) bf16
            b = wb[2 * li + 1][...]               # (1, N_pad)     f32
            z = jnp.dot(h, w, preferred_element_type=jnp.float32) + b
            if li < n_layers - 1:
                h = jnp.maximum(z, 0.0).astype(jnp.bfloat16)

        # Stable log_softmax along dim=1; padded logit columns are ~-1e30 so
        # they never win the max and exp() to 0 in the denominator.
        m = jnp.max(z, axis=1, keepdims=True)
        shifted = z - m
        lse = jnp.log(jnp.sum(jnp.exp(shifted), axis=1, keepdims=True))
        o_ref[...] = (shifted - lse).astype(o_ref.dtype)

    return kernel


@functools.partial(jax.jit, static_argnames=("block_b",))
def nn_forward(x_nchw, params, block_b=_DEFAULT_BLOCK_B):
    """Matches NN.forward: flatten, fused MLP + log_softmax Pallas kernel.

    params: flat list [w1, b1, ..., wn, bn]; w_i is (in, out), b_i is (1, out).
    """
    B = x_nchw.shape[0]
    x = x_nchw.reshape(B, -1)                     # x.view(B, -1)
    if x.dtype != jnp.bfloat16:                   # keep bf16 inputs as-is
        x = x.astype(jnp.float32)
    in_dim = x.shape[1]
    x_itemsize = jnp.dtype(x.dtype).itemsize

    ws = list(params[0::2])
    bs = list(params[1::2])
    n_layers = len(ws)
    out_dim = ws[-1].shape[1]

    # --- lane-aligned padding of K / hidden / output dims (multiples of 128) -
    dims = [in_dim] + [w.shape[1] for w in ws]
    dims_pad = [_round_up(d, _LANE) for d in dims]
    k0, out_pad = dims_pad[0], dims_pad[-1]

    ws_p, bs_p = [], []
    for i, (w, b) in enumerate(zip(ws, bs)):
        kp, np_ = dims_pad[i], dims_pad[i + 1]
        # Zero-padded weight rows/cols contribute nothing; final-layer padded
        # bias columns are -1e30 so padded logits vanish in the softmax.
        ws_p.append(_pad2d(w.astype(jnp.float32), kp, np_).astype(jnp.bfloat16))
        fill = _NEG_BIG if i == n_layers - 1 else 0.0
        bs_p.append(_pad2d(b.reshape(1, -1).astype(jnp.float32), 1, np_, fill))

    weight_res = sum(w.size * 2 for w in ws_p) + sum(b.size * 4 for b in bs_p)

    # --- batch tiling with VMEM residency guard ------------------------------
    cap = block_b
    while True:
        TB, Bp = _choose_batch_tile(B, cap)
        act_bytes = 2 * TB * k0 * x_itemsize + 2 * TB * out_pad * 4
        tmp_bytes = TB * sum(dims_pad[1:]) * 6 + TB * out_pad * 8
        need = weight_res + act_bytes + tmp_bytes
        if need <= _VMEM_BUDGET or TB == _SUBLANE:
            break
        cap = max(_SUBLANE, TB // 2)
    # TODO(synk): if weight_res alone exceeds the VMEM budget (large hidden
    # dims on v7x), tile the largest layer over N/K on an extra "arbitrary"
    # grid axis instead of keeping every layer whole in VMEM.

    pad_b = Bp - B                                # at most 7 rows
    pad_k = k0 - in_dim
    if pad_b or pad_k:
        x = jnp.pad(x, ((0, pad_b), (0, pad_k)))
    grid = (Bp // TB,)

    x_spec = pl.BlockSpec((TB, k0), lambda i: (i, 0))
    out_spec = pl.BlockSpec((TB, out_pad), lambda i: (i, 0))
    wb_specs, flat_wb = [], []
    for w, b in zip(ws_p, bs_p):
        wb_specs += [_resident_spec(w.shape), _resident_spec(b.shape)]
        flat_wb += [w, b]

    flops = 2 * Bp * sum(dims_pad[i] * dims_pad[i + 1] for i in range(n_layers))
    cost = pl.CostEstimate(
        flops=int(flops),
        transcendentals=int(Bp * out_pad),
        bytes_accessed=int(Bp * k0 * x_itemsize + Bp * out_pad * 4 + weight_res),
    )
    vmem_limit = int(min(max(2 * need, 32 << 20), _VMEM_BUDGET))

    out = pl.pallas_call(
        _make_mlp_kernel(n_layers),
        out_shape=jax.ShapeDtypeStruct((Bp, out_pad), jnp.float32),
        grid_spec=pltpu.PrefetchScalarGridSpec(
            num_scalar_prefetch=0,
            grid=grid,
            in_specs=[x_spec] + wb_specs,
            out_specs=out_spec,
        ),
        compiler_params=pltpu.CompilerParams(
            dimension_semantics=("parallel",),
            vmem_limit_bytes=vmem_limit,
        ),
        cost_estimate=cost,
    )(x, *flat_wb)

    # Slice padded batch rows / logit columns away (in f32, before any cast).
    return out[:B, :out_dim]


def _xavier_normal(key, fan_in, fan_out):
    """nn.init.xavier_normal_: N(0, sqrt(2 / (fan_in + fan_out)))."""
    std = (2.0 / (fan_in + fan_out)) ** 0.5
    # Stored as (in, out) so the kernel can do x @ W directly.
    return std * jax.random.normal(key, (fan_in, fan_out), dtype=jnp.float32)


def init_params(key, in_dim, hidden_dims, out_dim):
    """Deterministic parameter init mirroring NN.__init__/_init_weights."""
    dims = [in_dim] + list(hidden_dims) + [out_dim]
    params = []
    for i in range(len(dims) - 1):
        key, sub = jax.random.split(key)
        w = _xavier_normal(sub, dims[i], dims[i + 1])
        b = jnp.zeros((1, dims[i + 1]), dtype=jnp.float32)   # constant_(bias, 0)
        params.extend([w, b])
    return params


def _reference_forward(x_nchw, params):
    """Pure-JAX f32 reference for sanity checking."""
    B = x_nchw.shape[0]
    h = x_nchw.reshape(B, -1).astype(jnp.float32)
    ws, bs = params[0::2], params[1::2]
    for i, (w, b) in enumerate(zip(ws, bs)):
        h = h @ w + b
        if i < len(ws) - 1:
            h = jnp.maximum(h, 0.0)
    return jax.nn.log_softmax(h, axis=1)


if __name__ == "__main__":
    # Small MNIST-like setup: batch=8, 1x8x8 images -> in_dim=64,
    # hidden_dims=[32, 32], out_dim=10.
    B, C, H, W = 8, 1, 8, 8
    in_dim = C * H * W
    hidden_dims = [32, 32]
    out_dim = 10

    key = jax.random.PRNGKey(0)
    key, xkey = jax.random.split(key)
    x = jax.random.normal(xkey, (B, C, H, W), dtype=jnp.float32)

    params = init_params(key, in_dim, hidden_dims, out_dim)

    out = nn_forward(x, params)
    out = jax.block_until_ready(out)

    # Sanity: shape, rows sum (in prob space) to 1, matches f32 reference up
    # to bf16-matmul tolerance.
    assert out.shape == (B, out_dim)
    row_sums = jnp.sum(jnp.exp(out), axis=1)
    assert bool(jnp.all(jnp.abs(row_sums - 1.0) < 1e-3))
    ref = _reference_forward(x, params)
    assert bool(jnp.max(jnp.abs(out - ref)) < 1e-1)

    print("KERNEL_OK")
</pallas_src>

<mosaic_0001>
module attributes {stable_mosaic.version = 11 : i64} {
  func.func @kernel(%arg0: i32, %arg1: memref<8x128xf32, #tpu.memory_space<vmem>>, %arg2: memref<128x128xbf16, #tpu.memory_space<vmem>>, %arg3: memref<1x128xf32, #tpu.memory_space<vmem>>, %arg4: memref<128x128xbf16, #tpu.memory_space<vmem>>, %arg5: memref<1x128xf32, #tpu.memory_space<vmem>>, %arg6: memref<128x128xbf16, #tpu.memory_space<vmem>>, %arg7: memref<1x128xf32, #tpu.memory_space<vmem>>, %arg8: memref<8x128xf32, #tpu.memory_space<vmem>>) attributes {dimension_semantics = [#tpu.dimension_semantics<parallel>], iteration_bounds = array<i64: 1>, scalar_prefetch = 0 : i64, scratch_operands = 0 : i64, tpu.core_type = #tpu.core_type<tc>, window_params = [{transform_indices = @transform_0, window_bounds = array<i64: 8, 128>}, {pipeline_mode = #tpu.pipeline_mode<synchronous>, transform_indices = @transform_1, window_bounds = array<i64: 128, 128>}, {pipeline_mode = #tpu.pipeline_mode<synchronous>, transform_indices = @transform_2, window_bounds = array<i64: 1, 128>}, {pipeline_mode = #tpu.pipeline_mode<synchronous>, transform_indices = @transform_3, window_bounds = array<i64: 128, 128>}, {pipeline_mode = #tpu.pipeline_mode<synchronous>, transform_indices = @transform_4, window_bounds = array<i64: 1, 128>}, {pipeline_mode = #tpu.pipeline_mode<synchronous>, transform_indices = @transform_5, window_bounds = array<i64: 128, 128>}, {pipeline_mode = #tpu.pipeline_mode<synchronous>, transform_indices = @transform_6, window_bounds = array<i64: 1, 128>}, {transform_indices = @transform_7, window_bounds = array<i64: 8, 128>}]} {
    %c0 = arith.constant 0 : index
    %c0_0 = arith.constant 0 : index
    %0 = vector.load %arg1[%c0, %c0_0] : memref<8x128xf32, #tpu.memory_space<vmem>>, vector<8x128xf32>
    %1 = arith.truncf %0 : vector<8x128xf32> to vector<8x128xbf16>
    %c0_1 = arith.constant 0 : index
    %c0_2 = arith.constant 0 : index
    %2 = vector.load %arg2[%c0_1, %c0_2] : memref<128x128xbf16, #tpu.memory_space<vmem>>, vector<128x128xbf16>
    %c0_3 = arith.constant 0 : index
    %c0_4 = arith.constant 0 : index
    %3 = vector.load %arg3[%c0_3, %c0_4] : memref<1x128xf32, #tpu.memory_space<vmem>>, vector<1x128xf32>
    %cst = arith.constant dense<0.000000e+00> : vector<8x128xf32>
    %4 = tpu.matmul %1, %2, %cst {dimension_numbers = #tpu.dot_dimension_numbers<[1], [0], [0], [1], [0, 0, 1, 1], [], []>} : vector<8x128xbf16>, vector<128x128xbf16>, vector<8x128xf32> -> vector<8x128xf32>
    %5 = vector.broadcast %3 : vector<1x128xf32> to vector<8x128xf32>
    %6 = arith.addf %4, %5 : vector<8x128xf32>
    %cst_5 = arith.constant 0.000000e+00 : f32
    %7 = vector.broadcast %cst_5 : f32 to vector<8x128xf32>
    %8 = arith.maximumf %6, %7 : vector<8x128xf32>
    %9 = arith.truncf %8 : vector<8x128xf32> to vector<8x128xbf16>
    %c0_6 = arith.constant 0 : index
    %c0_7 = arith.constant 0 : index
    %10 = vector.load %arg4[%c0_6, %c0_7] : memref<128x128xbf16, #tpu.memory_space<vmem>>, vector<128x128xbf16>
    %c0_8 = arith.constant 0 : index
    %c0_9 = arith.constant 0 : index
    %11 = vector.load %arg5[%c0_8, %c0_9] : memref<1x128xf32, #tpu.memory_space<vmem>>, vector<1x128xf32>
    %cst_10 = arith.constant dense<0.000000e+00> : vector<8x128xf32>
    %12 = tpu.matmul %9, %10, %cst_10 {dimension_numbers = #tpu.dot_dimension_numbers<[1], [0], [0], [1], [0, 0, 1, 1], [], []>} : vector<8x128xbf16>, vector<128x128xbf16>, vector<8x128xf32> -> vector<8x128xf32>
    %13 = vector.broadcast %11 : vector<1x128xf32> to vector<8x128xf32>
    %14 = arith.addf %12, %13 : vector<8x128xf32>
    %cst_11 = arith.constant 0.000000e+00 : f32
    %15 = vector.broadcast %cst_11 : f32 to vector<8x128xf32>
    %16 = arith.maximumf %14, %15 : vector<8x128xf32>
    %17 = arith.truncf %16 : vector<8x128xf32> to vector<8x128xbf16>
    %c0_12 = arith.constant 0 : index
    %c0_13 = arith.constant 0 : index
    %18 = vector.load %arg6[%c0_12, %c0_13] : memref<128x128xbf16, #tpu.memory_space<vmem>>, vector<128x128xbf16>
    %c0_14 = arith.constant 0 : index
    %c0_15 = arith.constant 0 : index
    %19 = vector.load %arg7[%c0_14, %c0_15] : memref<1x128xf32, #tpu.memory_space<vmem>>, vector<1x128xf32>
    %cst_16 = arith.constant dense<0.000000e+00> : vector<8x128xf32>
    %20 = tpu.matmul %17, %18, %cst_16 {dimension_numbers = #tpu.dot_dimension_numbers<[1], [0], [0], [1], [0, 0, 1, 1], [], []>} : vector<8x128xbf16>, vector<128x128xbf16>, vector<8x128xf32> -> vector<8x128xf32>
    %21 = vector.broadcast %19 : vector<1x128xf32> to vector<8x128xf32>
    %22 = arith.addf %20, %21 : vector<8x128xf32>
    %cst_17 = arith.constant dense<0xFF800000> : vector<8xf32>
    %23 = vector.multi_reduction <maximumf>, %22, %cst_17 [1] : vector<8x128xf32> to vector<8xf32>
    %24 = vector.shape_cast %23 : vector<8xf32> to vector<8x1xf32>
    %25 = vector.broadcast %24 : vector<8x1xf32> to vector<8x128xf32>
    %26 = arith.subf %22, %25 : vector<8x128xf32>
    %27 = math.exp %26 : vector<8x128xf32>
    %cst_18 = arith.constant dense<0.000000e+00> : vector<8xf32>
    %28 = vector.multi_reduction <add>, %27, %cst_18 [1] : vector<8x128xf32> to vector<8xf32>
    %29 = vector.shape_cast %28 : vector<8xf32> to vector<8x1xf32>
    %30 = math.log %29 : vector<8x1xf32>
    %31 = vector.broadcast %30 : vector<8x1xf32> to vector<8x128xf32>
    %32 = arith.subf %26, %31 : vector<8x128xf32>
    %c0_19 = arith.constant 0 : index
    %c0_20 = arith.constant 0 : index
    %33 = vector.load %arg8[%c0_19, %c0_20] : memref<8x128xf32, #tpu.memory_space<vmem>>, vector<8x128xf32>
    tpu.vector_store %arg8[%c0_19, %c0_20], %32 {strides = array<i32>} : memref<8x128xf32, #tpu.memory_space<vmem>>, vector<8x128xf32>,
    return
  }
  func.func @transform_0(%arg0: i32) -> (i32, i32) {
    %c0_i32 = arith.constant 0 : i32
    %c0_i32_0 = arith.constant 0 : i32
    return %arg0, %c0_i32 : i32, i32
  }
  func.func @transform_1(%arg0: i32) -> (i32, i32) {
    %c0_i32 = arith.constant 0 : i32
    %c0_i32_0 = arith.constant 0 : i32
    %c0_i32_1 = arith.constant 0 : i32
    return %c0_i32, %c0_i32_0 : i32, i32
  }
  func.func @transform_2(%arg0: i32) -> (i32, i32) {
    %c0_i32 = arith.constant 0 : i32
    %c0_i32_0 = arith.constant 0 : i32
    %c0_i32_1 = arith.constant 0 : i32
    return %c0_i32, %c0_i32_0 : i32, i32
  }
  func.func @transform_3(%arg0: i32) -> (i32, i32) {
    %c0_i32 = arith.constant 0 : i32
    %c0_i32_0 = arith.constant 0 : i32
    %c0_i32_1 = arith.constant 0 : i32
    return %c0_i32, %c0_i32_0 : i32, i32
  }
  func.func @transform_4(%arg0: i32) -> (i32, i32) {
    %c0_i32 = arith.constant 0 : i32
    %c0_i32_0 = arith.constant 0 : i32
    %c0_i32_1 = arith.constant 0 : i32
    return %c0_i32, %c0_i32_0 : i32, i32
  }
  func.func @transform_5(%arg0: i32) -> (i32, i32) {
    %c0_i32 = arith.constant 0 : i32
    %c0_i32_0 = arith.constant 0 : i32
    %c0_i32_1 = arith.constant 0 : i32
    return %c0_i32, %c0_i32_0 : i32, i32
  }
  func.func @transform_6(%arg0: i32) -> (i32, i32) {
    %c0_i32 = arith.constant 0 : i32
    %c0_i32_0 = arith.constant 0 : i32
    %c0_i32_1 = arith.constant 0 : i32
    return %c0_i32, %c0_i32_0 : i32, i32
  }
  func.func @transform_7(%arg0: i32) -> (i32, i32) {
    %c0_i32 = arith.constant 0 : i32
    %c0_i32_0 = arith.constant 0 : i32
    return %arg0, %c0_i32 : i32, i32
  }
}

</mosaic_0001>

<llo_original>
// kernel: nn_forward.1
$region0: #{nn_forward.1}
  #allocation0 [shape = 'u32[]', space=smem, size = 0x4, offset = 0x4, fixed_abs, tag = 'smem constant byte address 0x4 - core index']
  #allocation1 [shape = 'u32[144,128]{1,0:T(1,128)}', space=vmem, size = 0x12000, scoped, tag = 'internal scratch']
  %s0 = inlined_call_operand.vmem [shape: f32[8,128], index: 0, kind: input, shape index: {}]
  %s1 = inlined_call_operand.vmem [shape: bf16[128,128], index: 1, kind: input, shape index: {}]
  %s2 = inlined_call_operand.vmem [shape: f32[1,128], index: 2, kind: input, shape index: {}]
  %s3 = inlined_call_operand.vmem [shape: bf16[128,128], index: 3, kind: input, shape index: {}]
  %s4 = inlined_call_operand.vmem [shape: f32[1,128], index: 4, kind: input, shape index: {}]
  %s5 = inlined_call_operand.vmem [shape: bf16[128,128], index: 5, kind: input, shape index: {}]
  %s6 = inlined_call_operand.vmem [shape: f32[1,128], index: 6, kind: input, shape index: {}]
  %s7 = inlined_call_operand.hbm [shape: f32[8,128], index: 7, kind: output, shape index: {}]
  %s8 = sld [smem:[#allocation0]]
  $region38: #{nn_forward.1} parent=0
    _
  %s10 = ssub.s32 1, %s8
  %s11 = scalar_select 0, %s10, %s8
  $region1: #{nn_forward.1} parent=0
    #allocation2 [shape = 'u8[4096]{0}', space=vmem, size = 0x1000, scoped, tag = 'output window, operand 0, single buffered']
    #allocation3 [shape = 's32[1]{0}', space=sflag, size = 0x4, scoped, tag = 'scoped memory for nn_forward.1']
    %12 = vsyncpa [#allocation3], 0
    // Predicated region
    $region2: #{nn_forward.1} parent=1 // pred_check
      _
    $region3: #{nn_forward.1} parent=1 // pred_check_branch
      %14 = sbr.rel (0) target = $region5
    $region4: #{nn_forward.1} parent=1 // pred_region
      _
    $region5: #{nn_forward.1} parent=1 // pred_fallthru
      _
    // Predicated region
    $region6: #{nn_forward.1} parent=1 // pred_check
      _
    $region7: #{nn_forward.1} parent=1 // pred_check_branch
      %16 = sbr.rel (0) target = $region9
    $region8: #{nn_forward.1} parent=1 // pred_region
      _
    $region9: #{nn_forward.1} parent=1 // pred_fallthru
      _
    // Predicated region
    $region10: #{nn_forward.1} parent=1 // pred_check
      _
    $region11: #{nn_forward.1} parent=1 // pred_check_branch
      %18 = sbr.rel (0) target = $region13
    $region12: #{nn_forward.1} parent=1 // pred_region
      _
    $region13: #{nn_forward.1} parent=1 // pred_fallthru
      _
    // Predicated region
    $region14: #{nn_forward.1} parent=1 // pred_check
      _
    $region15: #{nn_forward.1} parent=1 // pred_check_branch
      %20 = sbr.rel (0) target = $region17
    $region16: #{nn_forward.1} parent=1 // pred_region
      _
    $region17: #{nn_forward.1} parent=1 // pred_fallthru
      _
    // Predicated region
    $region18: #{nn_forward.1} parent=1 // pred_check
      _
    $region19: #{nn_forward.1} parent=1 // pred_check_branch
      %22 = sbr.rel (0) target = $region21
    $region20: #{nn_forward.1} parent=1 // pred_region
      _
    $region21: #{nn_forward.1} parent=1 // pred_fallthru
      _
    // Predicated region
    $region22: #{nn_forward.1} parent=1 // pred_check
      _
    $region23: #{nn_forward.1} parent=1 // pred_check_branch
      %24 = sbr.rel (0) target = $region25
    $region24: #{nn_forward.1} parent=1 // pred_region
      _
    $region25: #{nn_forward.1} parent=1 // pred_fallthru
      _
    // Predicated region
    $region26: #{nn_forward.1} parent=1 // pred_check
      _
    $region27: #{nn_forward.1} parent=1 // pred_check_branch
      %26 = sbr.rel (0) target = $region29
    $region28: #{nn_forward.1} parent=1 // pred_region
      _
    $region29: #{nn_forward.1} parent=1 // pred_fallthru
      _
    %v28 = vld [vmem:[%s0] sm:$0xff]
    %v29 = vpack.c.bf16 %v28, %v28
    %v30 = vld [vmem:[%s1] sm:$0xf]
    %v31 = vld [vmem:[%s1 + $0x4] sm:$0xf]
    %v32 = vld [vmem:[%s1 + $0x8] sm:$0xf]
    %v33 = vld [vmem:[%s1 + $0xc] sm:$0xf]
    %v34 = vld [vmem:[%s1 + $0x10] sm:$0xf]
    %v35 = vld [vmem:[%s1 + $0x14] sm:$0xf]
    %v36 = vld [vmem:[%s1 + $0x18] sm:$0xf]
    %v37 = vld [vmem:[%s1 + $0x1c] sm:$0xf]
    %v38 = vld [vmem:[%s1 + $0x20] sm:$0xf]
    %v39 = vld [vmem:[%s1 + $0x24] sm:$0xf]
    %v40 = vld [vmem:[%s1 + $0x28] sm:$0xf]
    %v41 = vld [vmem:[%s1 + $0x2c] sm:$0xf]
    %v42 = vld [vmem:[%s1 + $0x30] sm:$0xf]
    %v43 = vld [vmem:[%s1 + $0x34] sm:$0xf]
    %v44 = vld [vmem:[%s1 + $0x38] sm:$0xf]
    %v45 = vld [vmem:[%s1 + $0x3c] sm:$0xf]
    %v46 = vld [vmem:[%s2] sm:$0x1]
    %v48 = vlaneseq
    %v49 = vshrl.u32 %v48, 7
    %v50 = vsub.s32 0, %v49
    %v51 = vrot.slane %v46, %v50
    %v69 = vunpack.c.l.b16 %v30
    %v70 = vunpack.c.l.b16 %v31
    %v71 = vunpack.c.l.b16 %v32
    %v72 = vunpack.c.l.b16 %v33
    %v73 = vunpack.c.l.b16 %v34
    %v74 = vunpack.c.l.b16 %v35
    %v75 = vunpack.c.l.b16 %v36
    %v76 = vunpack.c.l.b16 %v37
    %v77 = vunpack.c.l.b16 %v38
    %v78 = vunpack.c.l.b16 %v39
    %v79 = vunpack.c.l.b16 %v40
    %v80 = vunpack.c.l.b16 %v41
    %v81 = vunpack.c.l.b16 %v42
    %v82 = vunpack.c.l.b16 %v43
    %v83 = vunpack.c.l.b16 %v44
    %v84 = vunpack.c.l.b16 %v45
    %v85 = vpack.c.b16 %v70, %v69
    %v86 = vpack.c.b16 %v72, %v71
    %v87 = vpack.c.b16 %v74, %v73
    %v88 = vpack.c.b16 %v76, %v75
    %v89 = vpack.c.b16 %v78, %v77
    %v90 = vpack.c.b16 %v80, %v79
    %v91 = vpack.c.b16 %v82, %v81
    %v92 = vpack.c.b16 %v84, %v83
    %101 = vmatprep.subr.bf16.mxu0 0
    %102 = vmatpush1.bf16.msra.mxu0 %v85
    %103 = vmatprep.subr.bf16.mxu0 0
    %104 = vmatpush1.bf16.msra.mxu0 %v86
    %105 = vmatprep.subr.bf16.mxu0 0
    %106 = vmatpush1.bf16.msra.mxu0 %v87
    %107 = vmatprep.subr.bf16.mxu0 0
    %108 = vmatpush1.bf16.msra.mxu0 %v88
    %109 = vmatprep.subr.bf16.mxu0 0
    %110 = vmatpush1.bf16.msra.mxu0 %v89
    %111 = vmatprep.subr.bf16.mxu0 0
    %112 = vmatpush1.bf16.msra.mxu0 %v90
    %113 = vmatprep.subr.bf16.mxu0 0
    %114 = vmatpush1.bf16.msra.mxu0 %v91
    %115 = vmatprep.subr.bf16.mxu0 0
    %116 = vmatpush1.bf16.msra.mxu0 %v92
    %117 = vmatprep.subr.bf16.mxu0 0
    %118 = vmatpush1.bf16.msra.mxu0 0
    %119 = vmatprep.subr.bf16.mxu0 0
    %120 = vmatpush1.bf16.msra.mxu0 0
    %121 = vmatprep.subr.bf16.mxu0 0
    %122 = vmatpush1.bf16.msra.mxu0 0
    %123 = vmatprep.subr.bf16.mxu0 0
    %124 = vmatpush1.bf16.msra.mxu0 0
    %125 = vmatprep.subr.bf16.mxu0 0
    %126 = vmatpush1.bf16.msra.mxu0 0
    %127 = vmatprep.subr.bf16.mxu0 0
    %128 = vmatpush1.bf16.msra.mxu0 0
    %129 = vmatprep.subr.bf16.mxu0 0
    %130 = vmatpush1.bf16.msra.mxu0 0
    %131 = vmatprep.subr.bf16.mxu0 0
    %132 = vmatpush1.bf16.msra.mxu0 0
    %133 = vmatprep.mubr.bf16.mxu0 0
    %134 = vmatmul.mubr.bf16.gmra.mrb[0].mxu0 %v29
    %v135 = vpop.f32.mrb[0].mxu0
    %v136 = vadd.f32 %v51, %v135
    %v137 = vpop.f32.mrb[0].mxu0
    %v138 = vpop.f32.mrb[0].mxu0
    %v139 = vpop.f32.mrb[0].mxu0
    %140 = vdwg.mxu0
    %v141 = vmax.f32 %v136, 0.0
    %v142 = vpack.c.bf16 %v141, %v141
    %v143 = vld [vmem:[%s3] sm:$0xf]
    %v144 = vld [vmem:[%s3 + $0x4] sm:$0xf]
    %v145 = vld [vmem:[%s3 + $0x8] sm:$0xf]
    %v146 = vld [vmem:[%s3 + $0xc] sm:$0xf]
    %v147 = vld [vmem:[%s3 + $0x10] sm:$0xf]
    %v148 = vld [vmem:[%s3 + $0x14] sm:$0xf]
    %v149 = vld [vmem:[%s3 + $0x18] sm:$0xf]
    %v150 = vld [vmem:[%s3 + $0x1c] sm:$0xf]
    %v151 = vld [vmem:[%s3 + $0x20] sm:$0xf]
    %v152 = vld [vmem:[%s3 + $0x24] sm:$0xf]
    %v153 = vld [vmem:[%s3 + $0x28] sm:$0xf]
    %v154 = vld [vmem:[%s3 + $0x2c] sm:$0xf]
    %v155 = vld [vmem:[%s3 + $0x30] sm:$0xf]
    %v156 = vld [vmem:[%s3 + $0x34] sm:$0xf]
    %v157 = vld [vmem:[%s3 + $0x38] sm:$0xf]
    %v158 = vld [vmem:[%s3 + $0x3c] sm:$0xf]
    %v159 = vld [vmem:[%s4] sm:$0x1]
    %v161 = vlaneseq
    %v162 = vshrl.u32 %v161, 7
    %v163 = vsub.s32 0, %v162
    %v164 = vrot.slane %v159, %v163
    %v182 = vunpack.c.l.b16 %v143
    %v183 = vunpack.c.l.b16 %v144
    %v184 = vunpack.c.l.b16 %v145
    %v185 = vunpack.c.l.b16 %v146
    %v186 = vunpack.c.l.b16 %v147
    %v187 = vunpack.c.l.b16 %v148
    %v188 = vunpack.c.l.b16 %v149
    %v189 = vunpack.c.l.b16 %v150
    %v190 = vunpack.c.l.b16 %v151
    %v191 = vunpack.c.l.b16 %v152
    %v192 = vunpack.c.l.b16 %v153
    %v193 = vunpack.c.l.b16 %v154
    %v194 = vunpack.c.l.b16 %v155
    %v195 = vunpack.c.l.b16 %v156
    %v196 = vunpack.c.l.b16 %v157
    %v197 = vunpack.c.l.b16 %v158
    %v198 = vpack.c.b16 %v183, %v182
    %v199 = vpack.c.b16 %v185, %v184
    %v200 = vpack.c.b16 %v187, %v186
    %v201 = vpack.c.b16 %v189, %v188
    %v202 = vpack.c.b16 %v191, %v190
    %v203 = vpack.c.b16 %v193, %v192
    %v204 = vpack.c.b16 %v195, %v194
    %v205 = vpack.c.b16 %v197, %v196
    %214 = vmatprep.subr.bf16.mxu0 0
    %215 = vmatpush1.bf16.msra.mxu0 %v198
    %216 = vmatprep.subr.bf16.mxu0 0
    %217 = vmatpush1.bf16.msra.mxu0 %v199
    %218 = vmatprep.subr.bf16.mxu0 0
    %219 = vmatpush1.bf16.msra.mxu0 %v200
    %220 = vmatprep.subr.bf16.mxu0 0
    %221 = vmatpush1.bf16.msra.mxu0 %v201
    %222 = vmatprep.subr.bf16.mxu0 0
    %223 = vmatpush1.bf16.msra.mxu0 %v202
    %224 = vmatprep.subr.bf16.mxu0 0
    %225 = vmatpush1.bf16.msra.mxu0 %v203
    %226 = vmatprep.subr.bf16.mxu0 0
    %227 = vmatpush1.bf16.msra.mxu0 %v204
    %228 = vmatprep.subr.bf16.mxu0 0
    %229 = vmatpush1.bf16.msra.mxu0 %v205
    %230 = vmatprep.subr.bf16.mxu0 0
    %231 = vmatpush1.bf16.msra.mxu0 0
    %232 = vmatprep.subr.bf16.mxu0 0
    %233 = vmatpush1.bf16.msra.mxu0 0
    %234 = vmatprep.subr.bf16.mxu0 0
    %235 = vmatpush1.bf16.msra.mxu0 0
    %236 = vmatprep.subr.bf16.mxu0 0
    %237 = vmatpush1.bf16.msra.mxu0 0
    %238 = vmatprep.subr.bf16.mxu0 0
    %239 = vmatpush1.bf16.msra.mxu0 0
    %240 = vmatprep.subr.bf16.mxu0 0
    %241 = vmatpush1.bf16.msra.mxu0 0
    %242 = vmatprep.subr.bf16.mxu0 0
    %243 = vmatpush1.bf16.msra.mxu0 0
    %244 = vmatprep.subr.bf16.mxu0 0
    %245 = vmatpush1.bf16.msra.mxu0 0
    %246 = vmatprep.mubr.bf16.mxu0 0
    %247 = vmatmul.mubr.bf16.gmra.mrb[0].mxu0 %v142
    %v248 = vpop.f32.mrb[0].mxu0
    %v249 = vadd.f32 %v164, %v248
    %v250 = vpop.f32.mrb[0].mxu0
    %v251 = vpop.f32.mrb[0].mxu0
    %v252 = vpop.f32.mrb[0].mxu0
    %253 = vdwg.mxu0
    %v254 = vmax.f32 %v249, 0.0
    %v255 = vpack.c.bf16 %v254, %v254
    %v256 = vld [vmem:[%s5] sm:$0xf]
    %v257 = vld [vmem:[%s5 + $0x4] sm:$0xf]
    %v258 = vld [vmem:[%s5 + $0x8] sm:$0xf]
    %v259 = vld [vmem:[%s5 + $0xc] sm:$0xf]
    %v260 = vld [vmem:[%s5 + $0x10] sm:$0xf]
    %v261 = vld [vmem:[%s5 + $0x14] sm:$0xf]
    %v262 = vld [vmem:[%s5 + $0x18] sm:$0xf]
    %v263 = vld [vmem:[%s5 + $0x1c] sm:$0xf]
    %v264 = vld [vmem:[%s5 + $0x20] sm:$0xf]
    %v265 = vld [vmem:[%s5 + $0x24] sm:$0xf]
    %v266 = vld [vmem:[%s5 + $0x28] sm:$0xf]
    %v267 = vld [vmem:[%s5 + $0x2c] sm:$0xf]
    %v268 = vld [vmem:[%s5 + $0x30] sm:$0xf]
    %v269 = vld [vmem:[%s5 + $0x34] sm:$0xf]
    %v270 = vld [vmem:[%s5 + $0x38] sm:$0xf]
    %v271 = vld [vmem:[%s5 + $0x3c] sm:$0xf]
    %v272 = vld [vmem:[%s6] sm:$0x1]
    %v274 = vlaneseq
    %v275 = vshrl.u32 %v274, 7
    %v276 = vsub.s32 0, %v275
    %v277 = vrot.slane %v272, %v276
    %v295 = vunpack.c.l.b16 %v256
    %v296 = vunpack.c.l.b16 %v257
    %v297 = vunpack.c.l.b16 %v258
    %v298 = vunpack.c.l.b16 %v259
    %v299 = vunpack.c.l.b16 %v260
    %v300 = vunpack.c.l.b16 %v261
    %v301 = vunpack.c.l.b16 %v262
    %v302 = vunpack.c.l.b16 %v263
    %v303 = vunpack.c.l.b16 %v264
    %v304 = vunpack.c.l.b16 %v265
    %v305 = vunpack.c.l.b16 %v266
    %v306 = vunpack.c.l.b16 %v267
    %v307 = vunpack.c.l.b16 %v268
    %v308 = vunpack.c.l.b16 %v269
    %v309 = vunpack.c.l.b16 %v270
    %v310 = vunpack.c.l.b16 %v271
    %v311 = vpack.c.b16 %v296, %v295
    %v312 = vpack.c.b16 %v298, %v297
    %v313 = vpack.c.b16 %v300, %v299
    %v314 = vpack.c.b16 %v302, %v301
    %v315 = vpack.c.b16 %v304, %v303
    %v316 = vpack.c.b16 %v306, %v305
    %v317 = vpack.c.b16 %v308, %v307
    %v318 = vpack.c.b16 %v310, %v309
    %327 = vmatprep.subr.bf16.mxu0 0
    %328 = vmatpush1.bf16.msra.mxu0 %v311
    %329 = vmatprep.subr.bf16.mxu0 0
    %330 = vmatpush1.bf16.msra.mxu0 %v312
    %331 = vmatprep.subr.bf16.mxu0 0
    %332 = vmatpush1.bf16.msra.mxu0 %v313
    %333 = vmatprep.subr.bf16.mxu0 0
    %334 = vmatpush1.bf16.msra.mxu0 %v314
    %335 = vmatprep.subr.bf16.mxu0 0
    %336 = vmatpush1.bf16.msra.mxu0 %v315
    %337 = vmatprep.subr.bf16.mxu0 0
    %338 = vmatpush1.bf16.msra.mxu0 %v316
    %339 = vmatprep.subr.bf16.mxu0 0
    %340 = vmatpush1.bf16.msra.mxu0 %v317
    %341 = vmatprep.subr.bf16.mxu0 0
    %342 = vmatpush1.bf16.msra.mxu0 %v318
    %343 = vmatprep.subr.bf16.mxu0 0
    %344 = vmatpush1.bf16.msra.mxu0 0
    %345 = vmatprep.subr.bf16.mxu0 0
    %346 = vmatpush1.bf16.msra.mxu0 0
    %347 = vmatprep.subr.bf16.mxu0 0
    %348 = vmatpush1.bf16.msra.mxu0 0
    %349 = vmatprep.subr.bf16.mxu0 0
    %350 = vmatpush1.bf16.msra.mxu0 0
    %351 = vmatprep.subr.bf16.mxu0 0
    %352 = vmatpush1.bf16.msra.mxu0 0
    %353 = vmatprep.subr.bf16.mxu0 0
    %354 = vmatpush1.bf16.msra.mxu0 0
    %355 = vmatprep.subr.bf16.mxu0 0
    %356 = vmatpush1.bf16.msra.mxu0 0
    %357 = vmatprep.subr.bf16.mxu0 0
    %358 = vmatpush1.bf16.msra.mxu0 0
    %359 = vmatprep.mubr.bf16.mxu0 0
    %360 = vmatmul.mubr.bf16.gmra.mrb[0].mxu0 %v255
    %v361 = vpop.f32.mrb[0].mxu0
    %v362 = vadd.f32 %v277, %v361
    %v363 = vpop.f32.mrb[0].mxu0
    %v364 = vpop.f32.mrb[0].mxu0
    %v365 = vpop.f32.mrb[0].mxu0
    %366 = vdwg.mxu0
    %367 = vmax.xlane.f32.xlu0 %v362
    %v368 = vpop.xlane.xlu0 %367
    %v369 = vsub.f32 %v362, %v368
    %v370 = vmul.f32 %v369, 1.442695
    %v371 = vpow.pop %v370
    %372 = vadd.xlane.f32.xlu0 %v371
    %v373 = vpop.xlane.xlu0 %372
    %v374 = vlog2.pop %v373
    %v375 = vmul.f32 %v374, 0.6931472
    %v376 = vsub.f32 %v369, %v375
    %377 = vst [vmem:[#allocation2] sm:$0xff] %v376
    // Predicated region
    $region30: #{nn_forward.1} parent=1 // pred_check
      _
    $region31: #{nn_forward.1} parent=1 // pred_check_branch
      %379 = sbr.rel (0) target = $region33
    $region32: #{nn_forward.1} parent=1 // pred_region
      %s381 = ssub.s32 128, 128
      %382 = vsyncadd [#allocation3], %s381
      %s384 = sshll.u32 [#allocation2], 4
      %s385 = int_to_ptr.vmem [resolvable:$true] %s384
      %387 = dma.vmem_to_hbm [thread:$0]  %s385, 128, %s7, [#allocation3]
    $region33: #{nn_forward.1} parent=1 // pred_fallthru
      _
    // Predicated region
    $region34: #{nn_forward.1} parent=1 // pred_check
      _
    $region35: #{nn_forward.1} parent=1 // pred_check_branch
      %389 = sbr.rel (0) target = $region37
    $region36: #{nn_forward.1} parent=1 // pred_region
      %390 = dma.done [#allocation3], 128
    $region37: #{nn_forward.1} parent=1 // pred_fallthru
      _
    %391 = vsyncpa [#allocation3], 1

</llo_original>
